<compile_context>
chip_gen: v6e
topology: v6e:2x2x1
jax: 0.10.0
libtpu: 0.0.40
codegen_flags: <defaults>
</compile_context>

<pallas_src>
import functools

import jax
import jax.numpy as jnp
from jax import lax
from jax.experimental import pallas as pl
from jax.experimental.pallas import tpu as pltpu


def _vq_kernel(x_ref, e_ref, e2_ref, zq_ref, sse_ref):
    """One (batch, HW-tile) block of vector quantization.

    x_ref  : (D, TILE)  input slab, channels-first (== NCHW layout)
    e_ref  : (K, D)     full codebook
    e2_ref : (K, 1)     precomputed |e_k|^2 (grid-invariant, from wrapper)
    zq_ref : (D, TILE)  quantized output slab (channels-first)
    sse_ref: (1, 128)   per-tile partial sum of ||z_q - x||^2, lane-broadcast
                        (wrapper reads lane 0 and sums over tiles)
    """
    x = x_ref[...].astype(jnp.float32)        # (D, TILE)
    e = e_ref[...].astype(jnp.float32)        # (K, D)
    e2 = e2_ref[...].astype(jnp.float32)      # (K, 1)

    # argmin_k ||x - e_k||^2 == argmin_k (|e_k|^2 - 2 x.e_k): |x|^2 is constant
    # per column, so it is dropped from the distance used for argmin.
    ex = lax.dot_general(
        e, x,
        dimension_numbers=(((1,), (0,)), ((), ())),
        preferred_element_type=jnp.float32)                    # (K, TILE)
    dist = e2 - 2.0 * ex                                       # (K, TILE)

    K = e.shape[0]
    row = lax.broadcasted_iota(jnp.int32, dist.shape, 0)       # (K, TILE)
    min_d = jnp.min(dist, axis=0, keepdims=True)               # (1, TILE)
    # First-index argmin along K (matches torch.argmin tie-breaking).
    idx = jnp.min(jnp.where(dist == min_d, row, K),
                  axis=0, keepdims=True)                       # (1, TILE)

    # Gather codebook rows via one-hot matmul (MXU-friendly, no gather op):
    # z_q^T[d, n] = sum_k e[k, d] * onehot[k, n]  ->  (D, TILE), already NCHW.
    onehot = (row == idx).astype(jnp.float32)                  # (K, TILE)
    zq = lax.dot_general(
        e, onehot,
        dimension_numbers=(((0,), (0,)), ((), ())),
        preferred_element_type=jnp.float32)                    # (D, TILE)
    zq_ref[...] = zq.astype(zq_ref.dtype)

    # Per-tile partial of sum((z_q - x)^2); wrapper combines the partials.
    diff = zq - x
    part = jnp.sum(jnp.sum(diff * diff, axis=0, keepdims=True),
                   axis=1, keepdims=True)                      # (1, 1)
    sse_ref[...] = jnp.broadcast_to(part, sse_ref.shape)


def _pick_tile(hw, cap=2048):
    """Largest HW tile that (a) divides hw, (b) is lane-dense (a multiple of
    128) or equals hw, and (c) keeps the per-tile working set small enough for
    v5e's 16 MiB default scoped VMEM (and trivially v7x's 64 MiB physical)."""
    if hw <= cap:
        return hw
    for t in range(cap, 127, -128):
        if hw % t == 0:
            return t
    # TODO(synk): pad HW with a masked tail tile when no lane-dense divisor exists.
    return hw


@functools.partial(jax.jit, static_argnames=("commitment_cost", "tile_hw"))
def vq_forward(x, embeddings, commitment_cost=0.25, tile_hw=None):
    """Forward pass of the VQ module.

    x          : (B, C, H, W), C == embed_dim D
    embeddings : (K, D) codebook
    returns (z_q (B, C, H, W), commitment_loss, codebook_loss)
    """
    B, C, H, W = x.shape
    K, D = embeddings.shape
    assert C == D, "channel dim must equal embedding dim"

    HW = H * W
    if tile_hw is None:
        tile_hw = _pick_tile(HW)
    assert HW % tile_hw == 0, "HW must be divisible by the chosen tile"
    num_tiles = HW // tile_hw

    x3 = x.reshape(B, C, HW)                  # free reshape, no transpose
    # Grid-invariant |e_k|^2, hoisted out of the kernel body.
    e2 = jnp.sum(embeddings.astype(jnp.float32) ** 2, axis=1, keepdims=True)

    zq3, sse_part = pl.pallas_call(
        _vq_kernel,
        grid=(B, num_tiles),
        in_specs=[
            pl.BlockSpec((None, C, tile_hw), lambda b, t: (b, 0, t)),     # x slab
            pl.BlockSpec((K, D), lambda b, t: (0, 0)),                    # codebook
            pl.BlockSpec((K, 1), lambda b, t: (0, 0)),                    # |e_k|^2
        ],
        out_specs=(
            pl.BlockSpec((None, C, tile_hw), lambda b, t: (b, 0, t)),     # z_q slab
            pl.BlockSpec((None, None, 1, 128), lambda b, t: (b, t, 0, 0)),  # sse
        ),
        out_shape=(
            jax.ShapeDtypeStruct((B, C, HW), x.dtype),
            jax.ShapeDtypeStruct((B, num_tiles, 1, 128), jnp.float32),
        ),
        compiler_params=pltpu.CompilerParams(
            # No shared accumulator -> both axes parallel (v7x megacore split).
            dimension_semantics=("parallel", "parallel")),
    )(x3, embeddings, e2)

    z_q = zq3.reshape(B, C, H, W)             # free reshape back to NCHW

    # In the torch module: z_e = z_q + (x - z_q).detach() == x numerically
    # (the straight-through trick is gradient-only), so both losses reduce to
    # mean((z_q - x)^2).
    sse = jnp.sum(sse_part[:, :, 0, 0])
    mse = sse / jnp.float32(B * C * H * W)
    codebook_loss = mse
    commitment_loss = commitment_cost * mse
    return z_q, commitment_loss, codebook_loss


if __name__ == "__main__":
    num_embeddings = 64   # K
    embed_dim = 16        # D (== channel dim of the input)
    commitment_cost = 0.25

    key = jax.random.PRNGKey(0)
    k_emb, k_x = jax.random.split(key)

    # Deterministic init matching nn.Embedding.weight.uniform_(-1/K, 1/K).
    embeddings = jax.random.uniform(
        k_emb, (num_embeddings, embed_dim), dtype=jnp.float32,
        minval=-1.0 / num_embeddings, maxval=1.0 / num_embeddings)

    # Input: (B, C, H, W) with C == embed_dim.
    B, C, H, W = 2, embed_dim, 16, 16
    x = jax.random.normal(k_x, (B, C, H, W), dtype=jnp.float32) * 0.05

    z_q, commitment_loss, codebook_loss = vq_forward(
        x, embeddings, commitment_cost=commitment_cost)
    jax.block_until_ready((z_q, commitment_loss, codebook_loss))

    # Light sanity check against a pure-JAX reference of the same math
    # (full-expansion distance, as in the torch module).
    x_flat = jnp.transpose(x, (0, 2, 3, 1)).reshape(-1, C)
    dist = (jnp.sum(x_flat ** 2, axis=1, keepdims=True)
            + jnp.sum(embeddings ** 2, axis=1)[None, :]
            - 2.0 * x_flat @ embeddings.T)
    idx = jnp.argmin(dist, axis=1)
    zq_ref = jnp.transpose(embeddings[idx].reshape(B, H, W, C), (0, 3, 1, 2))
    assert jnp.allclose(z_q, zq_ref, atol=1e-5), "z_q mismatch"
    mse_ref = jnp.mean((zq_ref - x) ** 2)
    assert jnp.allclose(codebook_loss, mse_ref, atol=1e-6), "codebook loss mismatch"
    assert jnp.allclose(commitment_loss, commitment_cost * mse_ref,
                        atol=1e-6), "commitment loss mismatch"

    print("KERNEL_OK")
</pallas_src>

<mosaic_0001>
module attributes {stable_mosaic.version = 11 : i64} {
  func.func @_vq_kernel(%arg0: i32, %arg1: i32, %arg2: memref<1x16x256xf32, #tpu.memory_space<vmem>>, %arg3: memref<64x16xf32, #tpu.memory_space<vmem>>, %arg4: memref<64x1xf32, #tpu.memory_space<vmem>>, %arg5: memref<1x16x256xf32, #tpu.memory_space<vmem>>, %arg6: memref<1x1x1x128xf32, #tpu.memory_space<vmem>>) attributes {dimension_semantics = [#tpu.dimension_semantics<parallel>, #tpu.dimension_semantics<parallel>], iteration_bounds = array<i64: 2, 1>, scalar_prefetch = 0 : i64, scratch_operands = 0 : i64, tpu.core_type = #tpu.core_type<tc>, window_params = [{transform_indices = @transform_0, window_bounds = array<i64: 1, 16, 256>}, {pipeline_mode = #tpu.pipeline_mode<synchronous>, transform_indices = @transform_1, window_bounds = array<i64: 64, 16>}, {pipeline_mode = #tpu.pipeline_mode<synchronous>, transform_indices = @transform_2, window_bounds = array<i64: 64, 1>}, {transform_indices = @transform_3, window_bounds = array<i64: 1, 16, 256>}, {transform_indices = @transform_4, window_bounds = array<i64: 1, 1, 1, 128>}]} {
    %c0 = arith.constant 0 : index
    %c0_0 = arith.constant 0 : index
    %c0_1 = arith.constant 0 : index
    %0 = vector.load %arg2[%c0, %c0_0, %c0_1] : memref<1x16x256xf32, #tpu.memory_space<vmem>>, vector<1x16x256xf32>
    %1 = vector.shape_cast %0 : vector<1x16x256xf32> to vector<16x256xf32>
    %c0_2 = arith.constant 0 : index
    %c0_3 = arith.constant 0 : index
    %2 = vector.load %arg3[%c0_2, %c0_3] : memref<64x16xf32, #tpu.memory_space<vmem>>, vector<64x16xf32>
    %c0_4 = arith.constant 0 : index
    %c0_5 = arith.constant 0 : index
    %3 = vector.load %arg4[%c0_4, %c0_5] : memref<64x1xf32, #tpu.memory_space<vmem>>, vector<64x1xf32>
    %cst = arith.constant dense<0.000000e+00> : vector<64x256xf32>
    %4 = tpu.matmul %2, %1, %cst {dimension_numbers = #tpu.dot_dimension_numbers<[1], [0], [0], [1], [0, 0, 1, 1], [], []>} : vector<64x16xf32>, vector<16x256xf32>, vector<64x256xf32> -> vector<64x256xf32>
    %cst_6 = arith.constant 2.000000e+00 : f32
    %5 = vector.broadcast %cst_6 : f32 to vector<64x256xf32>
    %6 = arith.mulf %5, %4 : vector<64x256xf32>
    %7 = vector.broadcast %3 : vector<64x1xf32> to vector<64x256xf32>
    %8 = arith.subf %7, %6 : vector<64x256xf32>
    %9 = tpu.iota {dimensions = array<i32: 0>} : vector<64x256xi32>
    %cst_7 = arith.constant dense<0x7F800000> : vector<256xf32>
    %10 = vector.multi_reduction <minimumf>, %8, %cst_7 [0] : vector<64x256xf32> to vector<256xf32>
    %11 = vector.shape_cast %10 : vector<256xf32> to vector<1x256xf32>
    %12 = vector.broadcast %11 : vector<1x256xf32> to vector<64x256xf32>
    %13 = arith.cmpf oeq, %8, %12 : vector<64x256xf32>
    %c64_i32 = arith.constant 64 : i32
    %14 = vector.broadcast %c64_i32 : i32 to vector<64x256xi32>
    %15 = arith.select %13, %9, %14 : vector<64x256xi1>, vector<64x256xi32>
    %cst_8 = arith.constant dense<2147483647> : vector<256xi32>
    %16 = vector.multi_reduction <minsi>, %15, %cst_8 [0] : vector<64x256xi32> to vector<256xi32>
    %17 = vector.shape_cast %16 : vector<256xi32> to vector<1x256xi32>
    %18 = vector.broadcast %17 : vector<1x256xi32> to vector<64x256xi32>
    %19 = arith.cmpi eq, %9, %18 : vector<64x256xi32>
    %20 = arith.extui %19 : vector<64x256xi1> to vector<64x256xi32>
    %21 = arith.sitofp %20 : vector<64x256xi32> to vector<64x256xf32>
    %cst_9 = arith.constant dense<0.000000e+00> : vector<16x256xf32>
    %22 = tpu.matmul %2, %21, %cst_9 {dimension_numbers = #tpu.dot_dimension_numbers<[0], [0], [1], [1], [0, 1, 1, 1], [], []>} : vector<64x16xf32>, vector<64x256xf32>, vector<16x256xf32> -> vector<16x256xf32>
    %c0_10 = arith.constant 0 : index
    %c0_11 = arith.constant 0 : index
    %c0_12 = arith.constant 0 : index
    %23 = vector.load %arg5[%c0_10, %c0_11, %c0_12] : memref<1x16x256xf32, #tpu.memory_space<vmem>>, vector<1x16x256xf32>
    %24 = vector.shape_cast %23 : vector<1x16x256xf32> to vector<16x256xf32>
    %25 = vector.shape_cast %22 : vector<16x256xf32> to vector<1x16x256xf32>
    tpu.vector_store %arg5[%c0_10, %c0_11, %c0_12], %25 {strides = array<i32>} : memref<1x16x256xf32, #tpu.memory_space<vmem>>, vector<1x16x256xf32>,
    %26 = arith.subf %22, %1 : vector<16x256xf32>
    %27 = arith.mulf %26, %26 : vector<16x256xf32>
    %cst_13 = arith.constant dense<0.000000e+00> : vector<256xf32>
    %28 = vector.multi_reduction <add>, %27, %cst_13 [0] : vector<16x256xf32> to vector<256xf32>
    %29 = vector.shape_cast %28 : vector<256xf32> to vector<1x256xf32>
    %cst_14 = arith.constant dense<0.000000e+00> : vector<1xf32>
    %30 = vector.multi_reduction <add>, %29, %cst_14 [1] : vector<1x256xf32> to vector<1xf32>
    %31 = vector.shape_cast %30 : vector<1xf32> to vector<1x1xf32>
    %32 = vector.shape_cast %31 : vector<1x1xf32> to vector<1x1xf32>
    %33 = vector.broadcast %32 : vector<1x1xf32> to vector<1x128xf32>
    %c0_15 = arith.constant 0 : index
    %c0_16 = arith.constant 0 : index
    %c0_17 = arith.constant 0 : index
    %c0_18 = arith.constant 0 : index
    %34 = vector.load %arg6[%c0_15, %c0_16, %c0_17, %c0_18] : memref<1x1x1x128xf32, #tpu.memory_space<vmem>>, vector<1x1x1x128xf32>
    %35 = vector.shape_cast %34 : vector<1x1x1x128xf32> to vector<1x128xf32>
    %36 = vector.shape_cast %33 : vector<1x128xf32> to vector<1x1x1x128xf32>
    tpu.vector_store %arg6[%c0_15, %c0_16, %c0_17, %c0_18], %36 {strides = array<i32>} : memref<1x1x1x128xf32, #tpu.memory_space<vmem>>, vector<1x1x1x128xf32>,
    return
  }
  func.func @transform_0(%arg0: i32, %arg1: i32) -> (i32, i32, i32) {
    %c0_i32 = arith.constant 0 : i32
    %c0_i32_0 = arith.constant 0 : i32
    return %arg0, %c0_i32, %arg1 : i32, i32, i32
  }
  func.func @transform_1(%arg0: i32, %arg1: i32) -> (i32, i32) {
    %c0_i32 = arith.constant 0 : i32
    %c0_i32_0 = arith.constant 0 : i32
    %c0_i32_1 = arith.constant 0 : i32
    return %c0_i32, %c0_i32_0 : i32, i32
  }
  func.func @transform_2(%arg0: i32, %arg1: i32) -> (i32, i32) {
    %c0_i32 = arith.constant 0 : i32
    %c0_i32_0 = arith.constant 0 : i32
    %c0_i32_1 = arith.constant 0 : i32
    return %c0_i32, %c0_i32_0 : i32, i32
  }
  func.func @transform_3(%arg0: i32, %arg1: i32) -> (i32, i32, i32) {
    %c0_i32 = arith.constant 0 : i32
    %c0_i32_0 = arith.constant 0 : i32
    return %arg0, %c0_i32, %arg1 : i32, i32, i32
  }
  func.func @transform_4(%arg0: i32, %arg1: i32) -> (i32, i32, i32, i32) {
    %c0_i32 = arith.constant 0 : i32
    %c0_i32_0 = arith.constant 0 : i32
    %c0_i32_1 = arith.constant 0 : i32
    return %arg0, %arg1, %c0_i32, %c0_i32_0 : i32, i32, i32, i32
  }
}

</mosaic_0001>

<llo_original>
// kernel: vq_forward.1
$region0: #{vq_forward.1}
  #allocation0 [shape = 'u32[]', space=smem, size = 0x4, offset = 0x4, fixed_abs, tag = 'smem constant byte address 0x4 - core index']
  #allocation1 [shape = 'u32[144,128]{1,0:T(1,128)}', space=vmem, size = 0x12000, scoped, tag = 'internal scratch']
  %s0 = inlined_call_operand.vmem [shape: f32[2,16,256], index: 0, kind: input, shape index: {}]
  %s1 = inlined_call_operand.vmem [shape: f32[64,16], index: 1, kind: input, shape index: {}]
  %s2 = inlined_call_operand.vmem [shape: f32[64,1], index: 2, kind: input, shape index: {}]
  %s3 = inlined_call_operand.vmem [shape: f32[2,16,256], index: 3, kind: output, shape index: {0}]
  %s4 = inlined_call_operand.vmem [shape: f32[2,1,1,128], index: 4, kind: output, shape index: {1}]
  %5 = xla_tuple %s3, %s4
  %s6 = sld [smem:[#allocation0]]
  $region53: #{vq_forward.1} parent=0
    _
  %s8 = ssub.s32 1, %s6
  %s9 = scalar_select 0, %s8, %s6
  loop: start=0, step=1, limit=4
  $region2: #{vq_forward.1} parent=0 // loop_pre_header
    _
  $region3: #{vq_forward.1} parent=0 // loop_header
    %s11 = sphi 0, %s15
    %p12 = scmp.ge.s32.totalorder %s11, 4
    %s18 = sphi 0, %s30
    %s19 = sphi 0, %s26
    %s20 = sphi 0, %s18
    %s21 = sphi 0, %s19
    %s22 = sphi 0, %s20
    %s23 = sphi 0, %s21
    %s35 = sphi 0, %s37
    %s38 = sphi 0, %s35
    %s39 = sphi 0, %s38
    %s55 = sphi 0, %s39
    %s59 = sphi 0, %s59
    %s61 = sphi 0, %s59
    %s62 = sphi 0, %s61
    %s76 = sphi 0, %s62
    %s80 = sphi 0, %s80
    %s82 = sphi 0, %s80
    %s83 = sphi 0, %s82
    %s97 = sphi 0, %s83
    %s105 = sphi 0, %s107
    %s108 = sphi 0, %s105
    %s109 = sphi 0, %s108
    %s125 = sphi 0, %s109
    %s133 = sphi 0, %s135
    %s136 = sphi 0, %s133
    %s137 = sphi 0, %s136
    %s153 = sphi 0, %s137
  $region4: #{vq_forward.1} parent=0 // loop_header_branch
    %14 = sbr.rel (%p12) target = $region8
  $region5: #{vq_forward.1} parent=0 // loop_body
    %s16 = ssub.s32 %s11, 1
    %s17 = ssub.s32 %s11, 2
    %s24 = sadd.s32 1, %s19
    %p25 = scmp.ge.s32.totalorder %s24, 1
    %s26 = scalar_select %p25, 0, %s24
    %s27 = sadd.s32 1, %s18
    %s28 = scalar_select %p25, %s27, %s18
    %p29 = scmp.ge.s32.totalorder %s28, 2
    %s30 = scalar_select %p29, 0, %s28
    %s31 = ssub.s32 %s18, %s30
    %s32 = ssub.s32 %s19, %s26
    %s33 = sor.u32 %s31, %s32
    %p34 = scmp.eq.s32.totalorder %s33, 0
    %s36 = sadd.s32 %s35, 1
    %s37 = scalar_select %p34, %s35, %s36
    %p40 = pneg %p34
    %p41 = scmp.eq.s32.totalorder %s11, 1
    %p42 = por %p40, %p41
    %p43 = scmp.ne.s32.totalorder %s35, %s38
    %p44 = scmp.eq.s32.totalorder %s11, 0
    %p45 = por %p43, %p44
    %p46 = scmp.ne.s32.totalorder %s35, %s38
    %p47 = scmp.eq.s32.totalorder %s16, 1
    %p48 = por %p46, %p47
    %p49 = scmp.ne.s32.totalorder %s38, %s39
    %p50 = scmp.eq.s32.totalorder %s16, 0
    %p51 = por %p49, %p50
    %p52 = scmp.ne.s32.totalorder %s38, %s39
    %p53 = scmp.eq.s32.totalorder %s17, 1
    %p54 = por %p52, %p53
    %p56 = scmp.ne.s32.totalorder %s39, %s55
    %p57 = scmp.eq.s32.totalorder %s17, 0
    %p58 = por %p56, %p57
    %s60 = sadd.s32 %s59, 1
    %p63 = scmp.eq.s32.totalorder %s11, 1
    %p64 = scmp.ne.s32.totalorder %s59, %s61
    %p65 = scmp.eq.s32.totalorder %s11, 0
    %p66 = por %p64, %p65
    %p67 = scmp.ne.s32.totalorder %s59, %s61
    %p68 = scmp.eq.s32.totalorder %s16, 1
    %p69 = por %p67, %p68
    %p70 = scmp.ne.s32.totalorder %s61, %s62
    %p71 = scmp.eq.s32.totalorder %s16, 0
    %p72 = por %p70, %p71
    %p73 = scmp.ne.s32.totalorder %s61, %s62
    %p74 = scmp.eq.s32.totalorder %s17, 1
    %p75 = por %p73, %p74
    %p77 = scmp.ne.s32.totalorder %s62, %s76
    %p78 = scmp.eq.s32.totalorder %s17, 0
    %p79 = por %p77, %p78
    %s81 = sadd.s32 %s80, 1
    %p84 = scmp.eq.s32.totalorder %s11, 1
    %p85 = scmp.ne.s32.totalorder %s80, %s82
    %p86 = scmp.eq.s32.totalorder %s11, 0
    %p87 = por %p85, %p86
    %p88 = scmp.ne.s32.totalorder %s80, %s82
    %p89 = scmp.eq.s32.totalorder %s16, 1
    %p90 = por %p88, %p89
    %p91 = scmp.ne.s32.totalorder %s82, %s83
    %p92 = scmp.eq.s32.totalorder %s16, 0
    %p93 = por %p91, %p92
    %p94 = scmp.ne.s32.totalorder %s82, %s83
    %p95 = scmp.eq.s32.totalorder %s17, 1
    %p96 = por %p94, %p95
    %p98 = scmp.ne.s32.totalorder %s83, %s97
    %p99 = scmp.eq.s32.totalorder %s17, 0
    %p100 = por %p98, %p99
    %s101 = ssub.s32 %s18, %s30
    %s102 = ssub.s32 %s19, %s26
    %s103 = sor.u32 %s101, %s102
    %p104 = scmp.eq.s32.totalorder %s103, 0
    %s106 = sadd.s32 %s105, 1
    %s107 = scalar_select %p104, %s105, %s106
    %p110 = pneg %p104
    %p111 = scmp.eq.s32.totalorder %s11, 1
    %p112 = por %p110, %p111
    %p113 = scmp.ne.s32.totalorder %s105, %s108
    %p114 = scmp.eq.s32.totalorder %s11, 0
    %p115 = por %p113, %p114
    %p116 = scmp.ne.s32.totalorder %s105, %s108
    %p117 = scmp.eq.s32.totalorder %s16, 1
    %p118 = por %p116, %p117
    %p119 = scmp.ne.s32.totalorder %s108, %s109
    %p120 = scmp.eq.s32.totalorder %s16, 0
    %p121 = por %p119, %p120
    %p122 = scmp.ne.s32.totalorder %s108, %s109
    %p123 = scmp.eq.s32.totalorder %s17, 1
    %p124 = por %p122, %p123
    %p126 = scmp.ne.s32.totalorder %s109, %s125
    %p127 = scmp.eq.s32.totalorder %s17, 0
    %p128 = por %p126, %p127
    %s129 = ssub.s32 %s18, %s30
    %s130 = ssub.s32 %s19, %s26
    %s131 = sor.u32 %s129, %s130
    %p132 = scmp.eq.s32.totalorder %s131, 0
    %s134 = sadd.s32 %s133, 1
    %s135 = scalar_select %p132, %s133, %s134
    %p138 = pneg %p132
    %p139 = scmp.eq.s32.totalorder %s11, 1
    %p140 = por %p138, %p139
    %p141 = scmp.ne.s32.totalorder %s133, %s136
    %p142 = scmp.eq.s32.totalorder %s11, 0
    %p143 = por %p141, %p142
    %p144 = scmp.ne.s32.totalorder %s133, %s136
    %p145 = scmp.eq.s32.totalorder %s16, 1
    %p146 = por %p144, %p145
    %p147 = scmp.ne.s32.totalorder %s136, %s137
    %p148 = scmp.eq.s32.totalorder %s16, 0
    %p149 = por %p147, %p148
    %p150 = scmp.ne.s32.totalorder %s136, %s137
    %p151 = scmp.eq.s32.totalorder %s17, 1
    %p152 = por %p150, %p151
    %p154 = scmp.ne.s32.totalorder %s137, %s153
    %p155 = scmp.eq.s32.totalorder %s17, 0
    %p156 = por %p154, %p155
    %p157 = scmp.le.s32.totalorder 1, %s11
    %p158 = scmp.lt.s32.totalorder %s11, 3
    %p159 = pnand %p157, %p158
    %p160 = pneg %p159
    // Predicated region
    $region9: #{vq_forward.1} parent=5 // pred_check
      _
    $region10: #{vq_forward.1} parent=5 // pred_check_branch
      %162 = sbr.rel (%p159) target = $region12
    $region11: #{vq_forward.1} parent=5 // pred_region
      %s163 = ssub.s32 %s11, 1
      // Predicated region
      $region13: #{vq_forward.1} parent=11 // pred_check
        %p164 = pneg %p72
      $region14: #{vq_forward.1} parent=11 // pred_check_branch
        %166 = sbr.rel (%p164) target = $region16
      $region15: #{vq_forward.1} parent=11 // pred_region
        _
      $region16: #{vq_forward.1} parent=11 // pred_fallthru
        _
      // Predicated region
      $region17: #{vq_forward.1} parent=11 // pred_check
        %p167 = pneg %p93
      $region18: #{vq_forward.1} parent=11 // pred_check_branch
        %169 = sbr.rel (%p167) target = $region20
      $region19: #{vq_forward.1} parent=11 // pred_region
        _
      $region20: #{vq_forward.1} parent=11 // pred_fallthru
        _
    $region12: #{vq_forward.1} parent=5 // pred_fallthru
      _
    %p170 = scmp.lt.s32.totalorder %s11, 2
    // Predicated region
    $region21: #{vq_forward.1} parent=5 // pred_check
      %p171 = pneg %p170
    $region22: #{vq_forward.1} parent=5 // pred_check_branch
      %173 = sbr.rel (%p171) target = $region24
    $region23: #{vq_forward.1} parent=5 // pred_region
      // Predicated region
      $region25: #{vq_forward.1} parent=23 // pred_check
        %p174 = pneg %p45
      $region26: #{vq_forward.1} parent=23 // pred_check_branch
        %176 = sbr.rel (%p174) target = $region28
      $region27: #{vq_forward.1} parent=23 // pred_region
        %s177 = smul.u32 2, %s19
        %p178 = scmp.lt.s32.totalorder %s18, 1
        %s179 = scalar_select %p178, %s18, 1
        %p180 = scmp.lt.s32.totalorder %s177, 1
        %s181 = scalar_select %p180, %s177, 1
        %s182 = smul.addr %s179, 4
        %s183 = sadd.s32 %s181, %s182
        %s184 = smul.addr %s183, 8
        %s185 = scalar_lea.vmem %s0, %s184
        %s186 = smul.u32 2, %s19
      $region28: #{vq_forward.1} parent=23 // pred_fallthru
        _
    $region24: #{vq_forward.1} parent=5 // pred_fallthru
      _
    %p187 = scmp.le.s32.totalorder 1, %s11
    %p188 = scmp.lt.s32.totalorder %s11, 3
    %p189 = pnand %p187, %p188
    %p190 = pneg %p189
    // Predicated region
    $region29: #{vq_forward.1} parent=5 // pred_check
      _
    $region30: #{vq_forward.1} parent=5 // pred_check_branch
      %192 = sbr.rel (%p189) target = $region32
    $region31: #{vq_forward.1} parent=5 // pred_region
      %s193 = ssub.s32 %s11, 1
      %s194 = smul.u32 2, %s21
      %p195 = scmp.lt.s32.totalorder %s20, 1
      %s196 = scalar_select %p195, %s20, 1
      %p197 = scmp.lt.s32.totalorder %s194, 1
      %s198 = scalar_select %p197, %s194, 1
      %s199 = smul.addr %s196, 4
      %s200 = sadd.s32 %s198, %s199
      %s201 = smul.addr %s200, 8
      %s202 = scalar_lea.vmem %s0, %s201
      %p203 = pneg %p51
      %p204 = pneg %p48
      %p205 = pneg %p72
      %p206 = pneg %p69
      %p207 = pneg %p93
      %p208 = pneg %p90
      %p209 = pneg %p121
      %p210 = pneg %p118
      %s211 = smul.u32 2, %s21
      %p212 = scmp.lt.s32.totalorder %s20, 1
      %s213 = scalar_select %p212, %s20, 1
      %p214 = scmp.lt.s32.totalorder %s211, 1
      %s215 = scalar_select %p214, %s211, 1
      %s216 = smul.addr %s213, 4
      %s217 = sadd.s32 %s215, %s216
      %s218 = smul.addr %s217, 8
      %s219 = scalar_lea.vmem %s3, %s218
      %p220 = pneg %p149
      %p221 = pneg %p146
      %p222 = scmp.lt.s32.totalorder %s20, 1
      %s223 = scalar_select %p222, %s20, 1
      %p224 = scmp.lt.s32.totalorder %s21, 0
      %s225 = scalar_select %p224, %s21, 0
      %s226 = sadd.s32 %s225, %s223
      %s227 = scalar_lea.vmem %s4, %s226
      %s228 = smul.u32 2, %s21
      %p229 = scmp.lt.s32.totalorder %s20, 1
      %s230 = scalar_select %p229, %s20, 1
      %p231 = scmp.lt.s32.totalorder %s228, 1
      %s232 = scalar_select %p231, %s228, 1
      %s233 = smul.addr %s230, 4
      %s234 = sadd.s32 %s232, %s233
      %s235 = smul.addr %s234, 8
      %s236 = scalar_lea.vmem %s0, %s235
      %s237 = smul.u32 2, %s21
      %s238 = smul.u32 2, %s21
      %p239 = scmp.lt.s32.totalorder %s20, 1
      %s240 = scalar_select %p239, %s20, 1
      %p241 = scmp.lt.s32.totalorder %s238, 1
      %s242 = scalar_select %p241, %s238, 1
      %s243 = smul.addr %s240, 4
      %s244 = sadd.s32 %s242, %s243
      %s245 = smul.addr %s244, 8
      %s246 = scalar_lea.vmem %s3, %s245
      %s247 = smul.u32 2, %s21
      %p248 = scmp.lt.s32.totalorder %s20, 1
      %s249 = scalar_select %p248, %s20, 1
      %p250 = scmp.lt.s32.totalorder %s21, 0
      %s251 = scalar_select %p250, %s21, 0
      %s252 = sadd.s32 %s251, %s249
      %s253 = scalar_lea.vmem %s4, %s252
      %v254 = vld [vmem:[%s236] sm:$0xff]
      %v255 = vld [vmem:[%s236 + $0x8] sm:$0xff]
      %v256 = vld [vmem:[%s236 + $0x10] sm:$0xff]
      %v257 = vld [vmem:[%s236 + $0x18] sm:$0xff]
      %v258 = vld [vmem:[%s1] sm:$0xff]
      %v259 = vld [vmem:[%s1 + $0x8] sm:$0xff]
      %v260 = vld [vmem:[%s1 + $0x10] sm:$0xff]
      %v261 = vld [vmem:[%s1 + $0x18] sm:$0xff]
      %v262 = vld [vmem:[%s1 + $0x20] sm:$0xff]
      %v263 = vld [vmem:[%s1 + $0x28] sm:$0xff]
      %v264 = vld [vmem:[%s1 + $0x30] sm:$0xff]
      %v265 = vld [vmem:[%s1 + $0x38] sm:$0xff]
      %v266 = vld [vmem:[%s2] sm:$0xff]
      %v267 = vld [vmem:[%s2 + $0x8] sm:$0xff]
      %v268 = vld [vmem:[%s2 + $0x10] sm:$0xff]
      %v269 = vld [vmem:[%s2 + $0x18] sm:$0xff]
      %v270 = vld [vmem:[%s2 + $0x20] sm:$0xff]
      %v271 = vld [vmem:[%s2 + $0x28] sm:$0xff]
      %v272 = vld [vmem:[%s2 + $0x30] sm:$0xff]
      %v273 = vld [vmem:[%s2 + $0x38] sm:$0xff]
      %vm274 = vcmask 130048
      %v276 = vsel %vm274, %v258, 0
      %v279 = vsel %vm274, %v259, 0
      %v282 = vsel %vm274, %v260, 0
      %v285 = vsel %vm274, %v261, 0
      %v288 = vsel %vm274, %v262, 0
      %v291 = vsel %vm274, %v263, 0
      %v294 = vsel %vm274, %v264, 0
      %v297 = vsel %vm274, %v265, 0
      %299 = vmatprep.subr.mxu0 0.0
      %300 = vmatpush1.msra.mxu0 0.0
      %301 = vmatprep.subr.mxu0 0.0
      %302 = vmatpush1.msra.mxu0 0.0
      %303 = vmatprep.subr.mxu0 0.0
      %304 = vmatpush1.msra.mxu0 0.0
      %305 = vmatprep.subr.mxu0 0.0
      %306 = vmatpush1.msra.mxu0 0.0
      %307 = vmatprep.subr.mxu0 0.0
      %308 = vmatpush1.msra.mxu0 0.0
      %309 = vmatprep.subr.mxu0 0.0
      %310 = vmatpush1.msra.mxu0 0.0
      %311 = vmatprep.subr.mxu0 0.0
      %312 = vmatpush1.msra.mxu0 0.0
      %313 = vmatprep.subr.mxu0 0.0
      %314 = vmatpush1.msra.mxu0 0.0
      %315 = vmatprep.subr.mxu0 0.0
      %316 = vmatpush1.msra.mxu0 0.0
      %317 = vmatprep.subr.mxu0 0.0
      %318 = vmatpush1.msra.mxu0 0.0
      %319 = vmatprep.subr.mxu0 0.0
      %320 = vmatpush1.msra.mxu0 0.0
      %321 = vmatprep.subr.mxu0 0.0
      %322 = vmatpush1.msra.mxu0 0.0
      %323 = vmatprep.subr.mxu0 0.0
      %324 = vmatpush1.msra.mxu0 0.0
      %325 = vmatprep.subr.mxu0 0.0
      %326 = vmatpush1.msra.mxu0 0.0
      %327 = vmatprep.subr.mxu0 %v257
      %328 = vmatpush1.msra.mxu0 %v256
      %329 = vmatprep.subr.mxu0 %v255
      %330 = vmatpush1.msra.mxu0 %v254
      %331 = vmatprep.subr.mxu0 0.0
      %332 = vmatpush2.msra.mxu0 0.0
      %333 = vmatprep.subr.mxu0 0.0
      %334 = vmatpush2.msra.mxu0 0.0
      %335 = vmatprep.subr.mxu0 0.0
      %336 = vmatpush2.msra.mxu0 0.0
      %337 = vmatprep.subr.mxu0 0.0
      %338 = vmatpush2.msra.mxu0 0.0
      %339 = vmatprep.subr.mxu0 0.0
      %340 = vmatpush2.msra.mxu0 0.0
      %341 = vmatprep.subr.mxu0 0.0
      %342 = vmatpush2.msra.mxu0 0.0
      %343 = vmatprep.subr.mxu0 0.0
      %344 = vmatpush2.msra.mxu0 0.0
      %345 = vmatprep.subr.mxu0 0.0
      %346 = vmatpush2.msra.mxu0 0.0
      %347 = vmatprep.subr.mxu0 0.0
      %348 = vmatpush2.msra.mxu0 0.0
      %349 = vmatprep.subr.mxu0 0.0
      %350 = vmatpush2.msra.mxu0 0.0
      %351 = vmatprep.subr.mxu0 0.0
      %352 = vmatpush2.msra.mxu0 0.0
      %353 = vmatprep.subr.mxu0 0.0
      %354 = vmatpush2.msra.mxu0 0.0
      %355 = vmatprep.subr.mxu0 0.0
      %356 = vmatpush2.msra.mxu0 0.0
      %357 = vmatprep.subr.mxu0 0.0
      %358 = vmatpush2.msra.mxu0 0.0
      %359 = vmatprep.subr.mxu0 0.0
      %360 = vmatpush2.msra.mxu0 0.0
      %361 = vmatprep.subr.mxu0 0.0
      %362 = vmatpush2.msra.mxu0 0.0
      %363 = vmatprep.mubr.f32.mxu0 0.0
      %364 = vmatmul.mubr.f32.gmra.mxu0 %v276
      %v365 = vpop.f32.mrf.mxu0
      %v366 = vadd.f32 0.0, %v365
      %v367 = vpop.f32.mrf.mxu0
      %v368 = vadd.f32 0.0, %v367
      %369 = vmatprep.mubr.f32.mxu0 0.0
      %370 = vmatmul.mubr.f32.gmra.mxu0 %v279
      %v371 = vpop.f32.mrf.mxu0
      %v372 = vadd.f32 0.0, %v371
      %v373 = vpop.f32.mrf.mxu0
      %v374 = vadd.f32 0.0, %v373
      %375 = vmatprep.mubr.f32.mxu0 0.0
      %376 = vmatmul.mubr.f32.gmra.mxu0 %v282
      %v377 = vpop.f32.mrf.mxu0
      %v378 = vadd.f32 0.0, %v377
      %v379 = vpop.f32.mrf.mxu0
      %v380 = vadd.f32 0.0, %v379
      %381 = vmatprep.mubr.f32.mxu0 0.0
      %382 = vmatmul.mubr.f32.gmra.mxu0 %v285
      %v383 = vpop.f32.mrf.mxu0
      %v384 = vadd.f32 0.0, %v383
      %v385 = vpop.f32.mrf.mxu0
      %v386 = vadd.f32 0.0, %v385
      %387 = vmatprep.mubr.f32.mxu0 0.0
      %388 = vmatmul.mubr.f32.gmra.mxu0 %v288
      %v389 = vpop.f32.mrf.mxu0
      %v390 = vadd.f32 0.0, %v389
      %v391 = vpop.f32.mrf.mxu0
      %v392 = vadd.f32 0.0, %v391
      %393 = vmatprep.mubr.f32.mxu0 0.0
      %394 = vmatmul.mubr.f32.gmra.mxu0 %v291
      %v395 = vpop.f32.mrf.mxu0
      %v396 = vadd.f32 0.0, %v395
      %v397 = vpop.f32.mrf.mxu0
      %v398 = vadd.f32 0.0, %v397
      %399 = vmatprep.mubr.f32.mxu0 0.0
      %400 = vmatmul.mubr.f32.gmra.mxu0 %v294
      %v401 = vpop.f32.mrf.mxu0
      %v402 = vadd.f32 0.0, %v401
      %v403 = vpop.f32.mrf.mxu0
      %v404 = vadd.f32 0.0, %v403
      %405 = vmatprep.mubr.f32.mxu0 0.0
      %406 = vmatmul.mubr.f32.gmra.mxu0 %v297
      %v407 = vpop.f32.mrf.mxu0
      %v408 = vadd.f32 0.0, %v407
      %v409 = vpop.f32.mrf.mxu0
      %v410 = vadd.f32 0.0, %v409
      %411 = vdwg.mxu0
      %v412 = vmul.f32 %v366, 2.0
      %v413 = vmul.f32 %v368, 2.0
      %v414 = vmul.f32 %v372, 2.0
      %v415 = vmul.f32 %v374, 2.0
      %v416 = vmul.f32 %v378, 2.0
      %v417 = vmul.f32 %v380, 2.0
      %v418 = vmul.f32 %v384, 2.0
      %v419 = vmul.f32 %v386, 2.0
      %v420 = vmul.f32 %v390, 2.0
      %v421 = vmul.f32 %v392, 2.0
      %v422 = vmul.f32 %v396, 2.0
      %v423 = vmul.f32 %v398, 2.0
      %v424 = vmul.f32 %v402, 2.0
      %v425 = vmul.f32 %v404, 2.0
      %v426 = vmul.f32 %v408, 2.0
      %v427 = vmul.f32 %v410, 2.0
      %429 = vset.pattern.permute.xlu0 0
      %430 = vperm.xlu0 %429, %v266
      %v431 = vpop.permute.xlu0 %430
      %434 = vset.pattern.permute.xlu0 0
      %435 = vperm.xlu0 %434, %v267
      %v436 = vpop.permute.xlu0 %435
      %439 = vset.pattern.permute.xlu0 0
      %440 = vperm.xlu0 %439, %v268
      %v441 = vpop.permute.xlu0 %440
      %444 = vset.pattern.permute.xlu0 0
      %445 = vperm.xlu0 %444, %v269
      %v446 = vpop.permute.xlu0 %445
      %449 = vset.pattern.permute.xlu0 0
      %450 = vperm.xlu0 %449, %v270
      %v451 = vpop.permute.xlu0 %450
      %454 = vset.pattern.permute.xlu0 0
      %455 = vperm.xlu0 %454, %v271
      %v456 = vpop.permute.xlu0 %455
      %459 = vset.pattern.permute.xlu0 0
      %460 = vperm.xlu0 %459, %v272
      %v461 = vpop.permute.xlu0 %460
      %464 = vset.pattern.permute.xlu0 0
      %465 = vperm.xlu0 %464, %v273
      %v466 = vpop.permute.xlu0 %465
      %v468 = vsub.f32 %v431, %v412
      %v469 = vsub.f32 %v431, %v413
      %v470 = vsub.f32 %v436, %v414
      %v471 = vsub.f32 %v436, %v415
      %v472 = vsub.f32 %v441, %v416
      %v473 = vsub.f32 %v441, %v417
      %v474 = vsub.f32 %v446, %v418
      %v475 = vsub.f32 %v446, %v419
      %v476 = vsub.f32 %v451, %v420
      %v477 = vsub.f32 %v451, %v421
      %v478 = vsub.f32 %v456, %v422
      %v479 = vsub.f32 %v456, %v423
      %v480 = vsub.f32 %v461, %v424
      %v481 = vsub.f32 %v461, %v425
      %v482 = vsub.f32 %v466, %v426
      %v483 = vsub.f32 %v466, %v427
      %v484 = vlaneseq
      %v485 = vshrl.u32 %v484, 7
      %v486 = vadd.s32 %v485, 8
      %v487 = vadd.s32 %v485, 16
      %v488 = vadd.s32 %v485, 24
      %v489 = vadd.s32 %v485, 32
      %v490 = vadd.s32 %v485, 40
      %v491 = vadd.s32 %v485, 48
      %v492 = vadd.s32 %v485, 56
      %v493 = vmin.f32 %v468, %v472
      %v494 = vmin.f32 %v470, %v474
      %v495 = vmin.f32 %v493, %v476
      %v496 = vmin.f32 %v494, %v478
      %v497 = vmin.f32 %v495, %v480
      %v498 = vmin.f32 %v496, %v482
      %v499 = vmin.f32 %v497, %v498
      %v500 = vrot.slane %v499, 4
      %v501 = vmin.f32 %v499, %v500
      %v502 = vrot.slane %v501, 2
      %v503 = vmin.f32 %v501, %v502
      %v504 = vrot.slane %v503, 1
      %v505 = vmin.f32 %v503, %v504
      %v506 = vmin.f32 %v469, %v473
      %v507 = vmin.f32 %v471, %v475
      %v508 = vmin.f32 %v506, %v477
      %v509 = vmin.f32 %v507, %v479
      %v510 = vmin.f32 %v508, %v481
      %v511 = vmin.f32 %v509, %v483
      %v512 = vmin.f32 %v510, %v511
      %v513 = vrot.slane %v512, 4
      %v514 = vmin.f32 %v512, %v513
      %v515 = vrot.slane %v514, 2
      %v516 = vmin.f32 %v514, %v515
      %v517 = vrot.slane %v516, 1
      %v518 = vmin.f32 %v516, %v517
      %vm519 = vcmp.eq.f32.partialorder %v468, %v505
      %vm520 = vcmp.eq.f32.partialorder %v469, %v518
      %vm521 = vcmp.eq.f32.partialorder %v470, %v505
      %vm522 = vcmp.eq.f32.partialorder %v471, %v518
      %vm523 = vcmp.eq.f32.partialorder %v472, %v505
      %vm524 = vcmp.eq.f32.partialorder %v473, %v518
      %vm525 = vcmp.eq.f32.partialorder %v474, %v505
      %vm526 = vcmp.eq.f32.partialorder %v475, %v518
      %vm527 = vcmp.eq.f32.partialorder %v476, %v505
      %vm528 = vcmp.eq.f32.partialorder %v477, %v518
      %vm529 = vcmp.eq.f32.partialorder %v478, %v505
      %vm530 = vcmp.eq.f32.partialorder %v479, %v518
      %vm531 = vcmp.eq.f32.partialorder %v480, %v505
      %vm532 = vcmp.eq.f32.partialorder %v481, %v518
      %vm533 = vcmp.eq.f32.partialorder %v482, %v505
      %vm534 = vcmp.eq.f32.partialorder %v483, %v518
      %v535 = vsel %vm519, %v485, 64
      %v536 = vsel %vm520, %v485, 64
      %v537 = vsel %vm521, %v486, 64
      %v538 = vsel %vm522, %v486, 64
      %v539 = vsel %vm523, %v487, 64
      %v540 = vsel %vm524, %v487, 64
      %v541 = vsel %vm525, %v488, 64
      %v542 = vsel %vm526, %v488, 64
      %v543 = vsel %vm527, %v489, 64
      %v544 = vsel %vm528, %v489, 64
      %v545 = vsel %vm529, %v490, 64
      %v546 = vsel %vm530, %v490, 64
      %v547 = vsel %vm531, %v491, 64
      %v548 = vsel %vm532, %v491, 64
      %v549 = vsel %vm533, %v492, 64
      %v550 = vsel %vm534, %v492, 64
      %vm551 = vcmp.lt.s32.totalorder %v535, %v539
      %v552 = vsel %vm551, %v535, %v539
      %vm553 = vcmp.lt.s32.totalorder %v537, %v541
      %v554 = vsel %vm553, %v537, %v541
      %vm555 = vcmp.lt.s32.totalorder %v552, %v543
      %v556 = vsel %vm555, %v552, %v543
      %vm557 = vcmp.lt.s32.totalorder %v554, %v545
      %v558 = vsel %vm557, %v554, %v545
      %vm559 = vcmp.lt.s32.totalorder %v556, %v547
      %v560 = vsel %vm559, %v556, %v547
      %vm561 = vcmp.lt.s32.totalorder %v558, %v549
      %v562 = vsel %vm561, %v558, %v549
      %vm563 = vcmp.lt.s32.totalorder %v560, %v562
      %v564 = vsel %vm563, %v560, %v562
      %v565 = vrot.slane %v564, 4
      %vm566 = vcmp.lt.s32.totalorder %v564, %v565
      %v567 = vsel %vm566, %v564, %v565
      %v568 = vrot.slane %v567, 2
      %vm569 = vcmp.lt.s32.totalorder %v567, %v568
      %v570 = vsel %vm569, %v567, %v568
      %v571 = vrot.slane %v570, 1
      %vm572 = vcmp.lt.s32.totalorder %v570, %v571
      %v573 = vsel %vm572, %v570, %v571
      %vm574 = vcmp.lt.s32.totalorder %v536, %v540
      %v575 = vsel %vm574, %v536, %v540
      %vm576 = vcmp.lt.s32.totalorder %v538, %v542
      %v577 = vsel %vm576, %v538, %v542
      %vm578 = vcmp.lt.s32.totalorder %v575, %v544
      %v579 = vsel %vm578, %v575, %v544
      %vm580 = vcmp.lt.s32.totalorder %v577, %v546
      %v581 = vsel %vm580, %v577, %v546
      %vm582 = vcmp.lt.s32.totalorder %v579, %v548
      %v583 = vsel %vm582, %v579, %v548
      %vm584 = vcmp.lt.s32.totalorder %v581, %v550
      %v585 = vsel %vm584, %v581, %v550
      %vm586 = vcmp.lt.s32.totalorder %v583, %v585
      %v587 = vsel %vm586, %v583, %v585
      %v588 = vrot.slane %v587, 4
      %vm589 = vcmp.lt.s32.totalorder %v587, %v588
      %v590 = vsel %vm589, %v587, %v588
      %v591 = vrot.slane %v590, 2
      %vm592 = vcmp.lt.s32.totalorder %v590, %v591
      %v593 = vsel %vm592, %v590, %v591
      %v594 = vrot.slane %v593, 1
      %vm595 = vcmp.lt.s32.totalorder %v593, %v594
      %v596 = vsel %vm595, %v593, %v594
      %vm597 = vcmp.eq.s32.totalorder %v485, %v573
      %vm598 = vcmp.eq.s32.totalorder %v485, %v596
      %vm599 = vcmp.eq.s32.totalorder %v486, %v573
      %vm600 = vcmp.eq.s32.totalorder %v486, %v596
      %vm601 = vcmp.eq.s32.totalorder %v487, %v573
      %vm602 = vcmp.eq.s32.totalorder %v487, %v596
      %vm603 = vcmp.eq.s32.totalorder %v488, %v573
      %vm604 = vcmp.eq.s32.totalorder %v488, %v596
      %vm605 = vcmp.eq.s32.totalorder %v489, %v573
      %vm606 = vcmp.eq.s32.totalorder %v489, %v596
      %vm607 = vcmp.eq.s32.totalorder %v490, %v573
      %vm608 = vcmp.eq.s32.totalorder %v490, %v596
      %vm609 = vcmp.eq.s32.totalorder %v491, %v573
      %vm610 = vcmp.eq.s32.totalorder %v491, %v596
      %vm611 = vcmp.eq.s32.totalorder %v492, %v573
      %vm612 = vcmp.eq.s32.totalorder %v492, %v596
      %v613 = vsel %vm597, 1, 0
      %v614 = vsel %vm598, 1, 0
      %v615 = vsel %vm599, 1, 0
      %v616 = vsel %vm600, 1, 0
      %v617 = vsel %vm601, 1, 0
      %v618 = vsel %vm602, 1, 0
      %v619 = vsel %vm603, 1, 0
      %v620 = vsel %vm604, 1, 0
      %v621 = vsel %vm605, 1, 0
      %v622 = vsel %vm606, 1, 0
      %v623 = vsel %vm607, 1, 0
      %v624 = vsel %vm608, 1, 0
      %v625 = vsel %vm609, 1, 0
      %v626 = vsel %vm610, 1, 0
      %v627 = vsel %vm611, 1, 0
      %v628 = vsel %vm612, 1, 0
      %v629 = vcvt.s32.f32 %v613
      %v630 = vcvt.s32.f32 %v614
      %v631 = vcvt.s32.f32 %v615
      %v632 = vcvt.s32.f32 %v616
      %v633 = vcvt.s32.f32 %v617
      %v634 = vcvt.s32.f32 %v618
      %v635 = vcvt.s32.f32 %v619
      %v636 = vcvt.s32.f32 %v620
      %v637 = vcvt.s32.f32 %v621
      %v638 = vcvt.s32.f32 %v622
      %v639 = vcvt.s32.f32 %v623
      %v640 = vcvt.s32.f32 %v624
      %v641 = vcvt.s32.f32 %v625
      %v642 = vcvt.s32.f32 %v626
      %v643 = vcvt.s32.f32 %v627
      %v644 = vcvt.s32.f32 %v628
      %645 = vxpose.xlu0.b32.start [1/16] %v258, 128
      %646 = vxpose.xlu0.b32.cont [2/16] %v259, 128
      %647 = vxpose.xlu0.b32.cont [3/16] %v260, 128
      %648 = vxpose.xlu0.b32.cont [4/16] %v261, 128
      %649 = vxpose.xlu0.b32.cont [5/16] %v262, 128
      %650 = vxpose.xlu0.b32.cont [6/16] %v263, 128
      %651 = vxpose.xlu0.b32.cont [7/16] %v264, 128
      %652 = vxpose.xlu0.b32.cont [8/16] %v265, 128
      %653 = vxpose.xlu0.b32.cont [9/16] 0.0, 128
      %654 = vxpose.xlu0.b32.cont [10/16] 0.0, 128
      %655 = vxpose.xlu0.b32.cont [11/16] 0.0, 128
      %656 = vxpose.xlu0.b32.cont [12/16] 0.0, 128
      %657 = vxpose.xlu0.b32.cont [13/16] 0.0, 128
      %658 = vxpose.xlu0.b32.cont [14/16] 0.0, 128
      %659 = vxpose.xlu0.b32.cont [15/16] 0.0, 128
      %660 = vxpose.xlu0.b32.end [16/16] 0.0, 128
      %v661 = vpop.trf.xlu0
      %v662 = vpop.trf.xlu0
      %v663 = vpop.trf.xlu0
      %v664 = vpop.trf.xlu0
      %v665 = vpop.trf.xlu0
      %v666 = vpop.trf.xlu0
      %v667 = vpop.trf.xlu0
      %v668 = vpop.trf.xlu0
      %v669 = vpop.trf.xlu0
      %v670 = vpop.trf.xlu0
      %v671 = vpop.trf.xlu0
      %v672 = vpop.trf.xlu0
      %v673 = vpop.trf.xlu0
      %v674 = vpop.trf.xlu0
      %v675 = vpop.trf.xlu0
      %v676 = vpop.trf.xlu0
      %vm677 = vcmask 523264
      %v679 = vsel %vm677, %v661, 0
      %v682 = vsel %vm677, %v662, 0
      %684 = vmatprep.subr.mxu0 0.0
      %685 = vmatpush1.msra.mxu0 0.0
      %686 = vmatprep.subr.mxu0 0.0
      %687 = vmatpush1.msra.mxu0 0.0
      %688 = vmatprep.subr.mxu0 0.0
      %689 = vmatpush1.msra.mxu0 0.0
      %690 = vmatprep.subr.mxu0 0.0
      %691 = vmatpush1.msra.mxu0 0.0
      %692 = vmatprep.subr.mxu0 0.0
      %693 = vmatpush1.msra.mxu0 0.0
      %694 = vmatprep.subr.mxu0 0.0
      %695 = vmatpush1.msra.mxu0 0.0
      %696 = vmatprep.subr.mxu0 0.0
      %697 = vmatpush1.msra.mxu0 0.0
      %698 = vmatprep.subr.mxu0 0.0
      %699 = vmatpush1.msra.mxu0 0.0
      %700 = vmatprep.subr.mxu0 %v644
      %701 = vmatpush1.msra.mxu0 %v643
      %702 = vmatprep.subr.mxu0 %v642
      %703 = vmatpush1.msra.mxu0 %v641
      %704 = vmatprep.subr.mxu0 %v640
      %705 = vmatpush1.msra.mxu0 %v639
      %706 = vmatprep.subr.mxu0 %v638
      %707 = vmatpush1.msra.mxu0 %v637
      %708 = vmatprep.subr.mxu0 %v636
      %709 = vmatpush1.msra.mxu0 %v635
      %710 = vmatprep.subr.mxu0 %v634
      %711 = vmatpush1.msra.mxu0 %v633
      %712 = vmatprep.subr.mxu0 %v632
      %713 = vmatpush1.msra.mxu0 %v631
      %714 = vmatprep.subr.mxu0 %v630
      %715 = vmatpush1.msra.mxu0 %v629
      %716 = vmatprep.subr.mxu0 0.0
      %717 = vmatpush2.msra.mxu0 0.0
      %718 = vmatprep.subr.mxu0 0.0
      %719 = vmatpush2.msra.mxu0 0.0
      %720 = vmatprep.subr.mxu0 0.0
      %721 = vmatpush2.msra.mxu0 0.0
      %722 = vmatprep.subr.mxu0 0.0
      %723 = vmatpush2.msra.mxu0 0.0
      %724 = vmatprep.subr.mxu0 0.0
      %725 = vmatpush2.msra.mxu0 0.0
      %726 = vmatprep.subr.mxu0 0.0
      %727 = vmatpush2.msra.mxu0 0.0
      %728 = vmatprep.subr.mxu0 0.0
      %729 = vmatpush2.msra.mxu0 0.0
      %730 = vmatprep.subr.mxu0 0.0
      %731 = vmatpush2.msra.mxu0 0.0
      %732 = vmatprep.subr.mxu0 0.0
      %733 = vmatpush2.msra.mxu0 0.0
      %734 = vmatprep.subr.mxu0 0.0
      %735 = vmatpush2.msra.mxu0 0.0
      %736 = vmatprep.subr.mxu0 0.0
      %737 = vmatpush2.msra.mxu0 0.0
      %738 = vmatprep.subr.mxu0 0.0
      %739 = vmatpush2.msra.mxu0 0.0
      %740 = vmatprep.subr.mxu0 0.0
      %741 = vmatpush2.msra.mxu0 0.0
      %742 = vmatprep.subr.mxu0 0.0
      %743 = vmatpush2.msra.mxu0 0.0
      %744 = vmatprep.subr.mxu0 0.0
      %745 = vmatpush2.msra.mxu0 0.0
      %746 = vmatprep.subr.mxu0 0.0
      %747 = vmatpush2.msra.mxu0 0.0
      %748 = vmatprep.mubr.f32.mxu0 0.0
      %749 = vmatmul.mubr.f32.gmra.mxu0 %v679
      %v750 = vpop.f32.mrf.mxu0
      %v751 = vadd.f32 0.0, %v750
      %v752 = vpop.f32.mrf.mxu0
      %v753 = vadd.f32 0.0, %v752
      %754 = vmatprep.mubr.f32.mxu0 0.0
      %755 = vmatmul.mubr.f32.gmra.mxu0 %v682
      %v756 = vpop.f32.mrf.mxu0
      %v757 = vadd.f32 0.0, %v756
      %v758 = vpop.f32.mrf.mxu0
      %v759 = vadd.f32 0.0, %v758
      %760 = vdwg.mxu0
      %761 = vst [vmem:[%s246] sm:$0xff] %v751
      %762 = vst [vmem:[%s246 + $0x8] sm:$0xff] %v753
      %763 = vst [vmem:[%s246 + $0x10] sm:$0xff] %v757
      %764 = vst [vmem:[%s246 + $0x18] sm:$0xff] %v759
      %v765 = vsub.f32 %v751, %v254
      %v766 = vsub.f32 %v753, %v255
      %v767 = vsub.f32 %v757, %v256
      %v768 = vsub.f32 %v759, %v257
      %v769 = vmul.f32 %v765, %v765
      %v770 = vmul.f32 %v766, %v766
      %v771 = vmul.f32 %v767, %v767
      %v772 = vmul.f32 %v768, %v768
      %v773 = vadd.f32 %v769, %v771
      %v774 = vrot.slane %v773, 4
      %v775 = vadd.f32 %v773, %v774
      %v776 = vrot.slane %v775, 2
      %v777 = vadd.f32 %v775, %v776
      %v778 = vrot.slane %v777, 1
      %v779 = vadd.f32 %v777, %v778
      %v780 = vadd.f32 %v770, %v772
      %v781 = vrot.slane %v780, 4
      %v782 = vadd.f32 %v780, %v781
      %v783 = vrot.slane %v782, 2
      %v784 = vadd.f32 %v782, %v783
      %v785 = vrot.slane %v784, 1
      %v786 = vadd.f32 %v784, %v785
      %v787 = vadd.f32 %v779, %v786
      %788 = vadd.xlane.f32.xlu0 %v787
      %v789 = vpop.xlane.xlu0 %788
      %790 = vst [vmem:[%s253] sm:$0x1] %v789
      %s791 = smul.u32 2, %s21
      %p792 = scmp.lt.s32.totalorder %s20, 1
      %s793 = scalar_select %p792, %s20, 1
      %p794 = scmp.lt.s32.totalorder %s791, 1
      %s795 = scalar_select %p794, %s791, 1
      %s796 = smul.addr %s793, 4
      %s797 = sadd.s32 %s795, %s796
      %s798 = smul.addr %s797, 8
      %s799 = scalar_lea.vmem %s3, %s798
      %p800 = scmp.lt.s32.totalorder %s20, 1
      %s801 = scalar_select %p800, %s20, 1
      %p802 = scmp.lt.s32.totalorder %s21, 0
      %s803 = scalar_select %p802, %s21, 0
      %s804 = sadd.s32 %s803, %s801
      %s805 = scalar_lea.vmem %s4, %s804
      // Predicated region
      $region33: #{vq_forward.1} parent=31 // pred_check
        %p806 = pneg %p118
      $region34: #{vq_forward.1} parent=31 // pred_check_branch
        %808 = sbr.rel (%p806) target = $region36
      $region35: #{vq_forward.1} parent=31 // pred_region
        %s809 = smul.u32 2, %s21
      $region36: #{vq_forward.1} parent=31 // pred_fallthru
        _
      // Predicated region
      $region37: #{vq_forward.1} parent=31 // pred_check
        %p810 = pneg %p146
      $region38: #{vq_forward.1} parent=31 // pred_check_branch
        %812 = sbr.rel (%p810) target = $region40
      $region39: #{vq_forward.1} parent=31 // pred_region
        _
      $region40: #{vq_forward.1} parent=31 // pred_fallthru
        _
    $region32: #{vq_forward.1} parent=5 // pred_fallthru
      _
    %p813 = scmp.le.s32.totalorder 2, %s11
    // Predicated region
    $region41: #{vq_forward.1} parent=5 // pred_check
      %p814 = pneg %p813
    $region42: #{vq_forward.1} parent=5 // pred_check_branch
      %816 = sbr.rel (%p814) target = $region44
    $region43: #{vq_forward.1} parent=5 // pred_region
      %s817 = ssub.s32 %s11, 2
      // Predicated region
      $region45: #{vq_forward.1} parent=43 // pred_check
        %p818 = pneg %p124
      $region46: #{vq_forward.1} parent=43 // pred_check_branch
        %820 = sbr.rel (%p818) target = $region48
      $region47: #{vq_forward.1} parent=43 // pred_region
        %s821 = smul.u32 2, %s23
        %p822 = scmp.lt.s32.totalorder %s22, 1
        %s823 = scalar_select %p822, %s22, 1
        %p824 = scmp.lt.s32.totalorder %s821, 1
        %s825 = scalar_select %p824, %s821, 1
        %s826 = smul.addr %s823, 4
        %s827 = sadd.s32 %s825, %s826
        %s828 = smul.addr %s827, 8
        %s829 = scalar_lea.vmem %s3, %s828
      $region48: #{vq_forward.1} parent=43 // pred_fallthru
        _
      // Predicated region
      $region49: #{vq_forward.1} parent=43 // pred_check
        %p830 = pneg %p152
      $region50: #{vq_forward.1} parent=43 // pred_check_branch
        %832 = sbr.rel (%p830) target = $region52
      $region51: #{vq_forward.1} parent=43 // pred_region
        %p833 = scmp.lt.s32.totalorder %s22, 1
        %s834 = scalar_select %p833, %s22, 1
        %p835 = scmp.lt.s32.totalorder %s23, 0
        %s836 = scalar_select %p835, %s23, 0
        %s837 = sadd.s32 %s836, %s834
        %s838 = scalar_lea.vmem %s4, %s837
      $region52: #{vq_forward.1} parent=43 // pred_fallthru
        _
    $region44: #{vq_forward.1} parent=5 // pred_fallthru
      _
  $region6: #{vq_forward.1} parent=0 // loop_footer
    %s15 = sadd.s32 1, %s11
  $region7: #{vq_forward.1} parent=0 // loop_footer_branch
    %10 = sbr.rel target = $region3
  $region8: #{vq_forward.1} parent=0 // loop_exit
    _

</llo_original>
